<compile_context>
chip_gen: v7x
topology: tpu7x:2x2x1
jax: 0.10.0
libtpu: 0.0.40
codegen_flags: <defaults>
</compile_context>

<pallas_src>
import math

import numpy as np
import jax
import jax.numpy as jnp
from jax.experimental import pallas as pl
from jax.experimental.pallas import tpu as pltpu

NEG_SLOPE = 0.1

_VMEM_LIMIT_BYTES = 48 * 1024 * 1024   # <= v7x's 64 MiB physical VMEM per TensorCore
_VMEM_TILE_BUDGET = 40 * 1024 * 1024   # budget for one grid step's buffers + temps


def _leaky_relu(x):
    return jnp.where(x > 0, x, NEG_SLOPE * x)


def _cdiv(a, b):
    return -(-a // b)


def _round_up(a, b):
    return _cdiv(a, b) * b


def _pack_factor(*dims):
    """Smallest p such that p*d is a multiple of 128 for every d in dims."""
    p = 1
    for d in dims:
        q = 128 // math.gcd(128, int(d))
        p = p * q // math.gcd(p, q)
    return p


def _block_diag(w, p):
    """p diagonal copies of w: (d_in, d_out) -> (p*d_in, p*d_out)."""
    if p == 1:
        return w
    return jnp.kron(jnp.eye(p, dtype=w.dtype), w)


def generator_mlp_kernel(x_ref, w1_ref, b1_ref, w2_ref, b2_ref, w3_ref, b3_ref, o_ref):
    """Fused 3-layer MLP (Linear -> LeakyReLU -> Linear -> LeakyReLU -> Linear).

    Operands arrive in the lane-dense packed layout (4 batch rows per 128-lane
    row, block-diagonal weights), so every load/store is full-width and no
    in-kernel repacking is needed.  Weights/biases are resident (single-
    buffered); each grid step streams one packed batch tile.
    """
    cdt = x_ref.dtype  # MXU ingest dtype (weights are pre-cast to match)
    h = jnp.dot(x_ref[...], w1_ref[...], preferred_element_type=jnp.float32)
    h = _leaky_relu(h + b1_ref[...])
    # Feed hidden activations back to the MXU in the input dtype (no-op for f32;
    # keeps the bf16 path native on v5e/v6e when x is bf16).
    h = jnp.dot(h.astype(cdt), w2_ref[...], preferred_element_type=jnp.float32)
    h = _leaky_relu(h + b2_ref[...])
    out = jnp.dot(h.astype(cdt), w3_ref[...], preferred_element_type=jnp.float32)
    o_ref[...] = (out + b3_ref[...]).astype(o_ref.dtype)


def generator_forward(x, params, *, batch_tile=8192, x_buffers=2):
    """Pallas wrapper for Generator.forward (and Generator.generate).

    batch_tile (original rows) is the main tuning knob — sweep 4096..32768 for
    large batches; x_buffers=3 is worth trying in the DMA-bound regime.
    """
    (w1, b1), (w2, b2), (w3, b3) = params
    B, d_in = x.shape
    d_h1 = w1.shape[1]
    d_h2 = w2.shape[1]
    d_out = w3.shape[1]
    itemsize = jnp.dtype(x.dtype).itemsize

    # ---- lane-dense packing factor -----------------------------------------------
    pack = _pack_factor(d_in, d_out)
    if pack > 16 or max(d_in, d_h1, d_h2, d_out) * pack > 2048:
        pack = 1  # pathological dims: fall back to the unpacked layout
    d_in_p, d_h1_p, d_h2_p, d_out_p = d_in * pack, d_h1 * pack, d_h2 * pack, d_out * pack

    # ---- pack the input: `pack` consecutive rows -> one lane-dense row (contiguous
    # reshape; no data-dependent shuffling) ------------------------------------------
    rem = B % pack
    if rem:
        # Rare path (batch not a multiple of `pack`): pad <= pack-1 rows.  This is
        # the only case that copies x; nicely-sized batches need no padding at all.
        x = jnp.pad(x, ((0, pack - rem), (0, 0)))
    B_eff = B + (pack - rem) % pack
    Bp = B_eff // pack
    x_packed = x.reshape(Bp, d_in_p)

    # ---- block-diagonal weight packing (tiny, resident) ----------------------------
    w1p = _block_diag(w1, pack).astype(x.dtype)
    w2p = _block_diag(w2, pack).astype(x.dtype)
    w3p = _block_diag(w3, pack).astype(x.dtype)
    b1p = jnp.tile(b1.reshape(1, -1), (1, pack)).astype(jnp.float32)
    b2p = jnp.tile(b2.reshape(1, -1), (1, pack)).astype(jnp.float32)
    b3p = jnp.tile(b3.reshape(1, -1), (1, pack)).astype(jnp.float32)

    # ---- batch tile, in packed rows -------------------------------------------------
    g = max(8, 32 // itemsize)  # sublane granularity: 8 f32 / 16 bf16 / 32 int8
    tile_p = max(g, (int(batch_tile) // pack // g) * g)

    # v7x megacore: once there's enough work, keep >= 2 grid steps so the "parallel"
    # batch axis can be sharded across both TensorCores.
    if Bp >= 2048:
        tile_p = min(tile_p, _round_up(_cdiv(Bp, 2), g))

    # Cap the tile so one grid step's streamed buffers + f32 temps fit the VMEM budget.
    bytes_per_row = ((max(2, int(x_buffers)) * d_in_p + 2 * d_out_p) * itemsize
                     + (d_h1_p + d_h2_p + d_out_p) * 4)
    tile_p = min(tile_p, max(g, (_VMEM_TILE_BUDGET // bytes_per_row // g) * g))

    if tile_p >= Bp:
        tile_p = Bp              # single step: block == full array, no alignment constraint
    n_tiles = _cdiv(Bp, tile_p)  # partial last block is handled by Pallas boundary masking

    # ---- specs ----------------------------------------------------------------------
    def resident(shape):
        # Grid-invariant operand: constant index_map + single buffer.
        return pl.BlockSpec(shape, lambda i: (0,) * len(shape),
                            pipeline_mode=pl.Buffered(1))

    x_buf = max(2, min(int(x_buffers), max(2, n_tiles)))
    if x_buf != 2:
        x_spec = pl.BlockSpec((tile_p, d_in_p), lambda i: (i, 0),
                              pipeline_mode=pl.Buffered(x_buf))
    else:
        x_spec = pl.BlockSpec((tile_p, d_in_p), lambda i: (i, 0))

    weight_bytes = itemsize * (d_in_p * d_h1_p + d_h1_p * d_h2_p + d_h2_p * d_out_p) \
        + 4 * (d_h1_p + d_h2_p + d_out_p)
    cost = pl.CostEstimate(
        flops=2 * Bp * (d_in_p * d_h1_p + d_h1_p * d_h2_p + d_h2_p * d_out_p),
        transcendentals=0,
        bytes_accessed=Bp * (d_in_p + d_out_p) * itemsize + weight_bytes,
    )

    out_packed = pl.pallas_call(
        generator_mlp_kernel,
        out_shape=jax.ShapeDtypeStruct((Bp, d_out_p), x.dtype),
        grid_spec=pltpu.PrefetchScalarGridSpec(
            num_scalar_prefetch=0,
            grid=(n_tiles,),
            in_specs=[
                x_spec,                        # streamed packed-x tile
                resident((d_in_p, d_h1_p)),    # W1 (block-diagonal)
                resident((1, d_h1_p)),         # b1 (tiled)
                resident((d_h1_p, d_h2_p)),    # W2
                resident((1, d_h2_p)),         # b2
                resident((d_h2_p, d_out_p)),   # W3
                resident((1, d_out_p)),        # b3
            ],
            out_specs=pl.BlockSpec((tile_p, d_out_p), lambda i: (i, 0)),
        ),
        compiler_params=pltpu.CompilerParams(
            dimension_semantics=("parallel",),      # batch tiles shard across TCs on v7x
            vmem_limit_bytes=_VMEM_LIMIT_BYTES,
        ),
        cost_estimate=cost,
    )(x_packed, w1p, b1p, w2p, b2p, w3p, b3p)

    out = out_packed.reshape(B_eff, d_out)
    return out[:B] if B_eff != B else out


def init_params(key, dim_1=32, dim_2=32, layer_expansion=2):
    """Deterministic synthetic weights with the shapes implied by the config."""
    d_h = layer_expansion * dim_1  # 64
    sizes = [(dim_1, d_h), (d_h, d_h), (d_h, dim_2)]
    params = []
    for fan_in, fan_out in sizes:
        kw, kb, key = jax.random.split(key, 3)
        bound = 1.0 / np.sqrt(fan_in)  # matches nn.Linear default init scale
        w = jax.random.uniform(kw, (fan_in, fan_out), jnp.float32, -bound, bound)
        b = jax.random.uniform(kb, (1, fan_out), jnp.float32, -bound, bound)
        params.append((w, b))
    return params


def reference_forward(x, params):
    (w1, b1), (w2, b2), (w3, b3) = params
    h = _leaky_relu(x @ w1 + b1)
    h = _leaky_relu(h @ w2 + b2)
    return h @ w3 + b3


if __name__ == "__main__":
    key = jax.random.PRNGKey(0)
    kx, kp = jax.random.split(key)

    batch, dim_1 = 8, 32
    x = jax.random.normal(kx, (batch, dim_1), dtype=jnp.float32)
    params = init_params(kp, dim_1=dim_1, dim_2=32, layer_expansion=2)

    out = jax.block_until_ready(generator_forward(x, params))
    ref = reference_forward(x, params)
    np.testing.assert_allclose(np.asarray(out), np.asarray(ref), rtol=2e-5, atol=2e-5)

    # Batch not a multiple of the pack factor (tiny tail pad) + a 2-step grid whose
    # trailing block is partial (exercises Pallas' masked boundary handling).
    x2 = jax.random.normal(jax.random.PRNGKey(1), (103, dim_1), dtype=jnp.float32)
    out2 = jax.block_until_ready(generator_forward(x2, params, batch_tile=64))
    ref2 = reference_forward(x2, params)
    np.testing.assert_allclose(np.asarray(out2), np.asarray(ref2), rtol=2e-5, atol=2e-5)

    # Deeper input pipelining (Buffered(3)) on a 4-step grid with a partial last block.
    x3 = jax.random.normal(jax.random.PRNGKey(2), (1000, dim_1), dtype=jnp.float32)
    out3 = jax.block_until_ready(generator_forward(x3, params, batch_tile=256, x_buffers=3))
    ref3 = reference_forward(x3, params)
    np.testing.assert_allclose(np.asarray(out3), np.asarray(ref3), rtol=2e-5, atol=2e-5)

    print("KERNEL_OK")
</pallas_src>

<mosaic_0001>
module attributes {stable_mosaic.version = 11 : i64} {
  func.func @generator_mlp_kernel(%arg0: i32, %arg1: memref<2x128xf32, #tpu.memory_space<vmem>>, %arg2: memref<128x256xf32, #tpu.memory_space<vmem>>, %arg3: memref<1x256xf32, #tpu.memory_space<vmem>>, %arg4: memref<256x256xf32, #tpu.memory_space<vmem>>, %arg5: memref<1x256xf32, #tpu.memory_space<vmem>>, %arg6: memref<256x128xf32, #tpu.memory_space<vmem>>, %arg7: memref<1x128xf32, #tpu.memory_space<vmem>>, %arg8: memref<2x128xf32, #tpu.memory_space<vmem>>) attributes {dimension_semantics = [#tpu.dimension_semantics<parallel>], iteration_bounds = array<i64: 1>, scalar_prefetch = 0 : i64, scratch_operands = 0 : i64, tpu.core_type = #tpu.core_type<tc>, window_params = [{transform_indices = @transform_0, window_bounds = array<i64: 2, 128>}, {pipeline_mode = #tpu.pipeline_mode<synchronous>, transform_indices = @transform_1, window_bounds = array<i64: 128, 256>}, {pipeline_mode = #tpu.pipeline_mode<synchronous>, transform_indices = @transform_2, window_bounds = array<i64: 1, 256>}, {pipeline_mode = #tpu.pipeline_mode<synchronous>, transform_indices = @transform_3, window_bounds = array<i64: 256, 256>}, {pipeline_mode = #tpu.pipeline_mode<synchronous>, transform_indices = @transform_4, window_bounds = array<i64: 1, 256>}, {pipeline_mode = #tpu.pipeline_mode<synchronous>, transform_indices = @transform_5, window_bounds = array<i64: 256, 128>}, {pipeline_mode = #tpu.pipeline_mode<synchronous>, transform_indices = @transform_6, window_bounds = array<i64: 1, 128>}, {transform_indices = @transform_7, window_bounds = array<i64: 2, 128>}]} {
    %c0 = arith.constant 0 : index
    %c0_0 = arith.constant 0 : index
    %0 = vector.load %arg1[%c0, %c0_0] : memref<2x128xf32, #tpu.memory_space<vmem>>, vector<2x128xf32>
    %c0_1 = arith.constant 0 : index
    %c0_2 = arith.constant 0 : index
    %1 = vector.load %arg2[%c0_1, %c0_2] : memref<128x256xf32, #tpu.memory_space<vmem>>, vector<128x256xf32>
    %cst = arith.constant dense<0.000000e+00> : vector<2x256xf32>
    %2 = tpu.matmul %0, %1, %cst {dimension_numbers = #tpu.dot_dimension_numbers<[1], [0], [0], [1], [0, 0, 1, 1], [], []>} : vector<2x128xf32>, vector<128x256xf32>, vector<2x256xf32> -> vector<2x256xf32>
    %c0_3 = arith.constant 0 : index
    %c0_4 = arith.constant 0 : index
    %3 = vector.load %arg3[%c0_3, %c0_4] : memref<1x256xf32, #tpu.memory_space<vmem>>, vector<1x256xf32>
    %4 = vector.broadcast %3 : vector<1x256xf32> to vector<2x256xf32>
    %5 = arith.addf %2, %4 : vector<2x256xf32>
    %cst_5 = arith.constant 0.000000e+00 : f32
    %6 = vector.broadcast %cst_5 : f32 to vector<2x256xf32>
    %7 = arith.cmpf ogt, %5, %6 : vector<2x256xf32>
    %cst_6 = arith.constant 1.000000e-01 : f32
    %8 = vector.broadcast %cst_6 : f32 to vector<2x256xf32>
    %9 = arith.mulf %8, %5 : vector<2x256xf32>
    %10 = arith.select %7, %5, %9 : vector<2x256xi1>, vector<2x256xf32>
    %c0_7 = arith.constant 0 : index
    %c0_8 = arith.constant 0 : index
    %11 = vector.load %arg4[%c0_7, %c0_8] : memref<256x256xf32, #tpu.memory_space<vmem>>, vector<256x256xf32>
    %cst_9 = arith.constant dense<0.000000e+00> : vector<2x256xf32>
    %12 = tpu.matmul %10, %11, %cst_9 {dimension_numbers = #tpu.dot_dimension_numbers<[1], [0], [0], [1], [0, 0, 1, 1], [], []>} : vector<2x256xf32>, vector<256x256xf32>, vector<2x256xf32> -> vector<2x256xf32>
    %c0_10 = arith.constant 0 : index
    %c0_11 = arith.constant 0 : index
    %13 = vector.load %arg5[%c0_10, %c0_11] : memref<1x256xf32, #tpu.memory_space<vmem>>, vector<1x256xf32>
    %14 = vector.broadcast %13 : vector<1x256xf32> to vector<2x256xf32>
    %15 = arith.addf %12, %14 : vector<2x256xf32>
    %cst_12 = arith.constant 0.000000e+00 : f32
    %16 = vector.broadcast %cst_12 : f32 to vector<2x256xf32>
    %17 = arith.cmpf ogt, %15, %16 : vector<2x256xf32>
    %cst_13 = arith.constant 1.000000e-01 : f32
    %18 = vector.broadcast %cst_13 : f32 to vector<2x256xf32>
    %19 = arith.mulf %18, %15 : vector<2x256xf32>
    %20 = arith.select %17, %15, %19 : vector<2x256xi1>, vector<2x256xf32>
    %c0_14 = arith.constant 0 : index
    %c0_15 = arith.constant 0 : index
    %21 = vector.load %arg6[%c0_14, %c0_15] : memref<256x128xf32, #tpu.memory_space<vmem>>, vector<256x128xf32>
    %cst_16 = arith.constant dense<0.000000e+00> : vector<2x128xf32>
    %22 = tpu.matmul %20, %21, %cst_16 {dimension_numbers = #tpu.dot_dimension_numbers<[1], [0], [0], [1], [0, 0, 1, 1], [], []>} : vector<2x256xf32>, vector<256x128xf32>, vector<2x128xf32> -> vector<2x128xf32>
    %c0_17 = arith.constant 0 : index
    %c0_18 = arith.constant 0 : index
    %23 = vector.load %arg7[%c0_17, %c0_18] : memref<1x128xf32, #tpu.memory_space<vmem>>, vector<1x128xf32>
    %24 = vector.broadcast %23 : vector<1x128xf32> to vector<2x128xf32>
    %25 = arith.addf %22, %24 : vector<2x128xf32>
    %c0_19 = arith.constant 0 : index
    %c0_20 = arith.constant 0 : index
    %26 = vector.load %arg8[%c0_19, %c0_20] : memref<2x128xf32, #tpu.memory_space<vmem>>, vector<2x128xf32>
    tpu.vector_store %arg8[%c0_19, %c0_20], %25 {strides = array<i32>} : memref<2x128xf32, #tpu.memory_space<vmem>>, vector<2x128xf32>,
    return
  }
  func.func @transform_0(%arg0: i32) -> (i32, i32) {
    %c0_i32 = arith.constant 0 : i32
    %c0_i32_0 = arith.constant 0 : i32
    return %arg0, %c0_i32 : i32, i32
  }
  func.func @transform_1(%arg0: i32) -> (i32, i32) {
    %c0_i32 = arith.constant 0 : i32
    %c0_i32_0 = arith.constant 0 : i32
    %c0_i32_1 = arith.constant 0 : i32
    return %c0_i32, %c0_i32_0 : i32, i32
  }
  func.func @transform_2(%arg0: i32) -> (i32, i32) {
    %c0_i32 = arith.constant 0 : i32
    %c0_i32_0 = arith.constant 0 : i32
    %c0_i32_1 = arith.constant 0 : i32
    return %c0_i32, %c0_i32_0 : i32, i32
  }
  func.func @transform_3(%arg0: i32) -> (i32, i32) {
    %c0_i32 = arith.constant 0 : i32
    %c0_i32_0 = arith.constant 0 : i32
    %c0_i32_1 = arith.constant 0 : i32
    return %c0_i32, %c0_i32_0 : i32, i32
  }
  func.func @transform_4(%arg0: i32) -> (i32, i32) {
    %c0_i32 = arith.constant 0 : i32
    %c0_i32_0 = arith.constant 0 : i32
    %c0_i32_1 = arith.constant 0 : i32
    return %c0_i32, %c0_i32_0 : i32, i32
  }
  func.func @transform_5(%arg0: i32) -> (i32, i32) {
    %c0_i32 = arith.constant 0 : i32
    %c0_i32_0 = arith.constant 0 : i32
    %c0_i32_1 = arith.constant 0 : i32
    return %c0_i32, %c0_i32_0 : i32, i32
  }
  func.func @transform_6(%arg0: i32) -> (i32, i32) {
    %c0_i32 = arith.constant 0 : i32
    %c0_i32_0 = arith.constant 0 : i32
    %c0_i32_1 = arith.constant 0 : i32
    return %c0_i32, %c0_i32_0 : i32, i32
  }
  func.func @transform_7(%arg0: i32) -> (i32, i32) {
    %c0_i32 = arith.constant 0 : i32
    %c0_i32_0 = arith.constant 0 : i32
    return %arg0, %c0_i32 : i32, i32
  }
}

</mosaic_0001>

<llo_original>
// kernel: tpu_custom_call.1
$region0: #{tpu_custom_call.1}
  #allocation0 [shape = 'u32[]', space=smem, size = 0x4, offset = 0x4, fixed_abs, tag = 'smem constant byte address 0x4 - core index']
  #allocation1 [shape = 'u32[144,128]{1,0:T(1,128)}', space=vmem, size = 0x12000, scoped, tag = 'internal scratch']
  %s0 = inlined_call_operand.hbm [shape: f32[2,128], index: 0, kind: input, shape index: {}]
  %s1 = inlined_call_operand.hbm [shape: f32[128,256], index: 1, kind: input, shape index: {}]
  %s2 = inlined_call_operand.vmem [shape: f32[1,256], index: 2, kind: input, shape index: {}]
  %s3 = inlined_call_operand.hbm [shape: f32[256,256], index: 3, kind: input, shape index: {}]
  %s4 = inlined_call_operand.vmem [shape: f32[1,256], index: 4, kind: input, shape index: {}]
  %s5 = inlined_call_operand.hbm [shape: f32[256,128], index: 5, kind: input, shape index: {}]
  %s6 = inlined_call_operand.vmem [shape: f32[1,128], index: 6, kind: input, shape index: {}]
  %s7 = inlined_call_operand.hbm [shape: f32[2,128], index: 7, kind: output, shape index: {}]
  %s8 = sld [smem:[#allocation0]]
  $region54: #{tpu_custom_call.1} parent=0
    _
  %s10 = ssub.s32 1, %s8
  %s11 = scalar_select 0, %s10, %s8
  $region1: #{tpu_custom_call.1} parent=0
    #allocation2 [shape = 'u8[1024]{0}', space=vmem, size = 0x400, scoped, tag = 'input window, operand 0, single buffered']
    #allocation3 [shape = 's32[1]{0}', space=sflag, size = 0x4, scoped, tag = 'scoped memory for tpu_custom_call.1']
    #allocation4 [shape = 's32[1]{0}', space=sflag, size = 0x4, scoped, tag = 'scoped memory for tpu_custom_call.1']
    #allocation5 [shape = 'u8[131072]{0}', space=vmem, size = 0x20000, scoped, tag = 'input window, operand 1, single buffered']
    #allocation6 [shape = 's32[1]{0}', space=sflag, size = 0x4, scoped, tag = 'scoped memory for tpu_custom_call.1']
    #allocation7 [shape = 'u8[262144]{0}', space=vmem, size = 0x40000, scoped, tag = 'input window, operand 3, single buffered']
    #allocation8 [shape = 'u8[131072]{0}', space=vmem, size = 0x20000, scoped, tag = 'input window, operand 5, single buffered']
    #allocation9 [shape = 's32[1]{0}', space=sflag, size = 0x4, scoped, tag = 'scoped memory for tpu_custom_call.1']
    #allocation10 [shape = 'u8[1024]{0}', space=vmem, size = 0x400, scoped, tag = 'output window, operand 0, single buffered']
    %12 = vsyncpa [#allocation3], 0
    %13 = vsyncpa [#allocation6], 0
    %14 = vsyncpa [#allocation9], 0
    %15 = vsyncpa [#allocation4], 0
    // Predicated region
    $region2: #{tpu_custom_call.1} parent=1 // pred_check
      _
    $region3: #{tpu_custom_call.1} parent=1 // pred_check_branch
      %17 = sbr.rel (0) target = $region5
    $region4: #{tpu_custom_call.1} parent=1 // pred_region
      %s19 = ssub.s32 32, 32
      %20 = vsyncadd [#allocation3], %s19
      %s22 = sshll.u32 [#allocation2], 4
      %s23 = int_to_ptr.vmem [resolvable:$true] %s22
      %25 = dma.hbm_to_vmem [thread:$0]  %s0, 32, %s23, [#allocation3]
    $region5: #{tpu_custom_call.1} parent=1 // pred_fallthru
      _
    // Predicated region
    $region6: #{tpu_custom_call.1} parent=1 // pred_check
      _
    $region7: #{tpu_custom_call.1} parent=1 // pred_check_branch
      %27 = sbr.rel (0) target = $region9
    $region8: #{tpu_custom_call.1} parent=1 // pred_region
      %s29 = ssub.s32 4096, 4096
      %30 = vsyncadd [#allocation6], %s29
      %s31 = sshll.u32 [#allocation5], 4
      %s32 = int_to_ptr.vmem [resolvable:$true] %s31
      %37 = dma.hbm_to_vmem [thread:$0]  %s1, 4096, %s32, [#allocation6], 256, 256, 16
    $region9: #{tpu_custom_call.1} parent=1 // pred_fallthru
      _
    // Predicated region
    $region10: #{tpu_custom_call.1} parent=1 // pred_check
      _
    $region11: #{tpu_custom_call.1} parent=1 // pred_check_branch
      %39 = sbr.rel (0) target = $region13
    $region12: #{tpu_custom_call.1} parent=1 // pred_region
      _
    $region13: #{tpu_custom_call.1} parent=1 // pred_fallthru
      _
    // Predicated region
    $region14: #{tpu_custom_call.1} parent=1 // pred_check
      _
    $region15: #{tpu_custom_call.1} parent=1 // pred_check_branch
      %41 = sbr.rel (0) target = $region17
    $region16: #{tpu_custom_call.1} parent=1 // pred_region
      %s43 = ssub.s32 8192, 8192
      %44 = vsyncadd [#allocation6], %s43
      %s45 = sshll.u32 [#allocation7], 4
      %s46 = int_to_ptr.vmem [resolvable:$true] %s45
      %51 = dma.hbm_to_vmem [thread:$0]  %s3, 8192, %s46, [#allocation6], 256, 256, 16
    $region17: #{tpu_custom_call.1} parent=1 // pred_fallthru
      _
    // Predicated region
    $region18: #{tpu_custom_call.1} parent=1 // pred_check
      _
    $region19: #{tpu_custom_call.1} parent=1 // pred_check_branch
      %53 = sbr.rel (0) target = $region21
    $region20: #{tpu_custom_call.1} parent=1 // pred_region
      _
    $region21: #{tpu_custom_call.1} parent=1 // pred_fallthru
      _
    // Predicated region
    $region22: #{tpu_custom_call.1} parent=1 // pred_check
      _
    $region23: #{tpu_custom_call.1} parent=1 // pred_check_branch
      %55 = sbr.rel (0) target = $region25
    $region24: #{tpu_custom_call.1} parent=1 // pred_region
      %s57 = ssub.s32 4096, 4096
      %58 = vsyncadd [#allocation9], %s57
      %s59 = sshll.u32 [#allocation8], 4
      %s60 = int_to_ptr.vmem [resolvable:$true] %s59
      %65 = dma.hbm_to_vmem [thread:$0]  %s5, 4096, %s60, [#allocation9], 128, 128, 8
    $region25: #{tpu_custom_call.1} parent=1 // pred_fallthru
      _
    // Predicated region
    $region26: #{tpu_custom_call.1} parent=1 // pred_check
      _
    $region27: #{tpu_custom_call.1} parent=1 // pred_check_branch
      %67 = sbr.rel (0) target = $region29
    $region28: #{tpu_custom_call.1} parent=1 // pred_region
      _
    $region29: #{tpu_custom_call.1} parent=1 // pred_fallthru
      _
    // Predicated region
    $region30: #{tpu_custom_call.1} parent=1 // pred_check
      _
    $region31: #{tpu_custom_call.1} parent=1 // pred_check_branch
      %69 = sbr.rel (0) target = $region33
    $region32: #{tpu_custom_call.1} parent=1 // pred_region
      %70 = dma.done [#allocation3], 32
    $region33: #{tpu_custom_call.1} parent=1 // pred_fallthru
      _
    // Predicated region
    $region34: #{tpu_custom_call.1} parent=1 // pred_check
      _
    $region35: #{tpu_custom_call.1} parent=1 // pred_check_branch
      %72 = sbr.rel (0) target = $region37
    $region36: #{tpu_custom_call.1} parent=1 // pred_region
      %73 = dma.done [#allocation6], 4096
    $region37: #{tpu_custom_call.1} parent=1 // pred_fallthru
      _
    // Predicated region
    $region38: #{tpu_custom_call.1} parent=1 // pred_check
      _
    $region39: #{tpu_custom_call.1} parent=1 // pred_check_branch
      %75 = sbr.rel (0) target = $region41
    $region40: #{tpu_custom_call.1} parent=1 // pred_region
      %76 = dma.done [#allocation6], 8192
    $region41: #{tpu_custom_call.1} parent=1 // pred_fallthru
      _
    // Predicated region
    $region42: #{tpu_custom_call.1} parent=1 // pred_check
      _
    $region43: #{tpu_custom_call.1} parent=1 // pred_check_branch
      %78 = sbr.rel (0) target = $region45
    $region44: #{tpu_custom_call.1} parent=1 // pred_region
      %79 = dma.done [#allocation9], 4096
    $region45: #{tpu_custom_call.1} parent=1 // pred_fallthru
      _
    %v80 = vld [vmem:[#allocation2] sm:$0x3]
    %v81 = vld [vmem:[#allocation5] sm:$0xff]
    %v82 = vld [vmem:[#allocation5 + $0x8] sm:$0xff]
    %v83 = vld [vmem:[#allocation5 + $0x10] sm:$0xff]
    %v84 = vld [vmem:[#allocation5 + $0x18] sm:$0xff]
    %v85 = vld [vmem:[#allocation5 + $0x20] sm:$0xff]
    %v86 = vld [vmem:[#allocation5 + $0x28] sm:$0xff]
    %v87 = vld [vmem:[#allocation5 + $0x30] sm:$0xff]
    %v88 = vld [vmem:[#allocation5 + $0x38] sm:$0xff]
    %v89 = vld [vmem:[#allocation5 + $0x40] sm:$0xff]
    %v90 = vld [vmem:[#allocation5 + $0x48] sm:$0xff]
    %v91 = vld [vmem:[#allocation5 + $0x50] sm:$0xff]
    %v92 = vld [vmem:[#allocation5 + $0x58] sm:$0xff]
    %v93 = vld [vmem:[#allocation5 + $0x60] sm:$0xff]
    %v94 = vld [vmem:[#allocation5 + $0x68] sm:$0xff]
    %v95 = vld [vmem:[#allocation5 + $0x70] sm:$0xff]
    %v96 = vld [vmem:[#allocation5 + $0x78] sm:$0xff]
    %v97 = vld [vmem:[#allocation5 + $0x80] sm:$0xff]
    %v98 = vld [vmem:[#allocation5 + $0x88] sm:$0xff]
    %v99 = vld [vmem:[#allocation5 + $0x90] sm:$0xff]
    %v100 = vld [vmem:[#allocation5 + $0x98] sm:$0xff]
    %v101 = vld [vmem:[#allocation5 + $0xa0] sm:$0xff]
    %v102 = vld [vmem:[#allocation5 + $0xa8] sm:$0xff]
    %v103 = vld [vmem:[#allocation5 + $0xb0] sm:$0xff]
    %v104 = vld [vmem:[#allocation5 + $0xb8] sm:$0xff]
    %v105 = vld [vmem:[#allocation5 + $0xc0] sm:$0xff]
    %v106 = vld [vmem:[#allocation5 + $0xc8] sm:$0xff]
    %v107 = vld [vmem:[#allocation5 + $0xd0] sm:$0xff]
    %v108 = vld [vmem:[#allocation5 + $0xd8] sm:$0xff]
    %v109 = vld [vmem:[#allocation5 + $0xe0] sm:$0xff]
    %v110 = vld [vmem:[#allocation5 + $0xe8] sm:$0xff]
    %v111 = vld [vmem:[#allocation5 + $0xf0] sm:$0xff]
    %v112 = vld [vmem:[#allocation5 + $0xf8] sm:$0xff]
    %v113 = vld [vmem:[%s2] sm:$0x3]
    %v115 = vlaneseq
    %v116 = vshrl.u32 %v115, 7
    %v117 = vsub.s32 0, %v116
    %v118 = vrot.slane %v113, %v117
    %v119 = vlaneseq
    %v120 = vshrl.u32 %v119, 7
    %v121 = vsub.s32 1, %v120
    %v122 = vrot.slane %v113, %v121
    %125 = vmatprep.subr.mxu0 %v82
    %126 = vmatpush1.msra.mxu0 %v81
    %127 = vmatprep.subr.mxu0 %v84
    %128 = vmatpush1.msra.mxu0 %v83
    %129 = vmatprep.subr.mxu0 %v86
    %130 = vmatpush1.msra.mxu0 %v85
    %131 = vmatprep.subr.mxu0 %v88
    %132 = vmatpush1.msra.mxu0 %v87
    %133 = vmatprep.subr.mxu0 %v90
    %134 = vmatpush1.msra.mxu0 %v89
    %135 = vmatprep.subr.mxu0 %v92
    %136 = vmatpush1.msra.mxu0 %v91
    %137 = vmatprep.subr.mxu0 %v94
    %138 = vmatpush1.msra.mxu0 %v93
    %139 = vmatprep.subr.mxu0 %v96
    %140 = vmatpush1.msra.mxu0 %v95
    %141 = vmatprep.subr.mxu0 %v98
    %142 = vmatpush1.msra.mxu0 %v97
    %143 = vmatprep.subr.mxu0 %v100
    %144 = vmatpush1.msra.mxu0 %v99
    %145 = vmatprep.subr.mxu0 %v102
    %146 = vmatpush1.msra.mxu0 %v101
    %147 = vmatprep.subr.mxu0 %v104
    %148 = vmatpush1.msra.mxu0 %v103
    %149 = vmatprep.subr.mxu0 %v106
    %150 = vmatpush1.msra.mxu0 %v105
    %151 = vmatprep.subr.mxu0 %v108
    %152 = vmatpush1.msra.mxu0 %v107
    %153 = vmatprep.subr.mxu0 %v110
    %154 = vmatpush1.msra.mxu0 %v109
    %155 = vmatprep.subr.mxu0 %v112
    %156 = vmatpush1.msra.mxu0 %v111
    %157 = vmatprep.subr.mxu0 0.0
    %158 = vmatpush1.msra.mxu0 0.0
    %159 = vmatprep.subr.mxu0 0.0
    %160 = vmatpush1.msra.mxu0 0.0
    %161 = vmatprep.subr.mxu0 0.0
    %162 = vmatpush1.msra.mxu0 0.0
    %163 = vmatprep.subr.mxu0 0.0
    %164 = vmatpush1.msra.mxu0 0.0
    %165 = vmatprep.subr.mxu0 0.0
    %166 = vmatpush1.msra.mxu0 0.0
    %167 = vmatprep.subr.mxu0 0.0
    %168 = vmatpush1.msra.mxu0 0.0
    %169 = vmatprep.subr.mxu0 0.0
    %170 = vmatpush1.msra.mxu0 0.0
    %171 = vmatprep.subr.mxu0 0.0
    %172 = vmatpush1.msra.mxu0 0.0
    %173 = vmatprep.subr.mxu0 0.0
    %174 = vmatpush1.msra.mxu0 0.0
    %175 = vmatprep.subr.mxu0 0.0
    %176 = vmatpush1.msra.mxu0 0.0
    %177 = vmatprep.subr.mxu0 0.0
    %178 = vmatpush1.msra.mxu0 0.0
    %179 = vmatprep.subr.mxu0 0.0
    %180 = vmatpush1.msra.mxu0 0.0
    %181 = vmatprep.subr.mxu0 0.0
    %182 = vmatpush1.msra.mxu0 0.0
    %183 = vmatprep.subr.mxu0 0.0
    %184 = vmatpush1.msra.mxu0 0.0
    %185 = vmatprep.subr.mxu0 0.0
    %186 = vmatpush1.msra.mxu0 0.0
    %187 = vmatprep.subr.mxu0 0.0
    %188 = vmatpush1.msra.mxu0 0.0
    %189 = vmatprep.mubr.f32.mxu0 0.0
    %190 = vmatmul.mubr.f32.gmra.mrb[0].mxu0 %v80
    %v191 = vpop.f32.mrb[0].mxu0
    %v192 = vadd.f32 %v118, %v191
    %v193 = vpop.f32.mrb[0].mxu0
    %v194 = vadd.f32 %v122, %v193
    %195 = vdwg.mxu0
    %vm196 = vcmp.gt.f32.partialorder %v192, 0.0
    %vm197 = vcmp.gt.f32.partialorder %v194, 0.0
    %v198 = vmul.f32 %v192, 0.1
    %v199 = vmul.f32 %v194, 0.1
    %v200 = vsel %vm196, %v192, %v198
    %v201 = vsel %vm197, %v194, %v199
    %v202 = vld [vmem:[#allocation7] sm:$0xff]
    %v203 = vld [vmem:[#allocation7 + $0x8] sm:$0xff]
    %v204 = vld [vmem:[#allocation7 + $0x10] sm:$0xff]
    %v205 = vld [vmem:[#allocation7 + $0x18] sm:$0xff]
    %v206 = vld [vmem:[#allocation7 + $0x20] sm:$0xff]
    %v207 = vld [vmem:[#allocation7 + $0x28] sm:$0xff]
    %v208 = vld [vmem:[#allocation7 + $0x30] sm:$0xff]
    %v209 = vld [vmem:[#allocation7 + $0x38] sm:$0xff]
    %v210 = vld [vmem:[#allocation7 + $0x40] sm:$0xff]
    %v211 = vld [vmem:[#allocation7 + $0x48] sm:$0xff]
    %v212 = vld [vmem:[#allocation7 + $0x50] sm:$0xff]
    %v213 = vld [vmem:[#allocation7 + $0x58] sm:$0xff]
    %v214 = vld [vmem:[#allocation7 + $0x60] sm:$0xff]
    %v215 = vld [vmem:[#allocation7 + $0x68] sm:$0xff]
    %v216 = vld [vmem:[#allocation7 + $0x70] sm:$0xff]
    %v217 = vld [vmem:[#allocation7 + $0x78] sm:$0xff]
    %v218 = vld [vmem:[#allocation7 + $0x80] sm:$0xff]
    %v219 = vld [vmem:[#allocation7 + $0x88] sm:$0xff]
    %v220 = vld [vmem:[#allocation7 + $0x90] sm:$0xff]
    %v221 = vld [vmem:[#allocation7 + $0x98] sm:$0xff]
    %v222 = vld [vmem:[#allocation7 + $0xa0] sm:$0xff]
    %v223 = vld [vmem:[#allocation7 + $0xa8] sm:$0xff]
    %v224 = vld [vmem:[#allocation7 + $0xb0] sm:$0xff]
    %v225 = vld [vmem:[#allocation7 + $0xb8] sm:$0xff]
    %v226 = vld [vmem:[#allocation7 + $0xc0] sm:$0xff]
    %v227 = vld [vmem:[#allocation7 + $0xc8] sm:$0xff]
    %v228 = vld [vmem:[#allocation7 + $0xd0] sm:$0xff]
    %v229 = vld [vmem:[#allocation7 + $0xd8] sm:$0xff]
    %v230 = vld [vmem:[#allocation7 + $0xe0] sm:$0xff]
    %v231 = vld [vmem:[#allocation7 + $0xe8] sm:$0xff]
    %v232 = vld [vmem:[#allocation7 + $0xf0] sm:$0xff]
    %v233 = vld [vmem:[#allocation7 + $0xf8] sm:$0xff]
    %v234 = vld [vmem:[#allocation7 + $0x100] sm:$0xff]
    %v235 = vld [vmem:[#allocation7 + $0x108] sm:$0xff]
    %v236 = vld [vmem:[#allocation7 + $0x110] sm:$0xff]
    %v237 = vld [vmem:[#allocation7 + $0x118] sm:$0xff]
    %v238 = vld [vmem:[#allocation7 + $0x120] sm:$0xff]
    %v239 = vld [vmem:[#allocation7 + $0x128] sm:$0xff]
    %v240 = vld [vmem:[#allocation7 + $0x130] sm:$0xff]
    %v241 = vld [vmem:[#allocation7 + $0x138] sm:$0xff]
    %v242 = vld [vmem:[#allocation7 + $0x140] sm:$0xff]
    %v243 = vld [vmem:[#allocation7 + $0x148] sm:$0xff]
    %v244 = vld [vmem:[#allocation7 + $0x150] sm:$0xff]
    %v245 = vld [vmem:[#allocation7 + $0x158] sm:$0xff]
    %v246 = vld [vmem:[#allocation7 + $0x160] sm:$0xff]
    %v247 = vld [vmem:[#allocation7 + $0x168] sm:$0xff]
    %v248 = vld [vmem:[#allocation7 + $0x170] sm:$0xff]
    %v249 = vld [vmem:[#allocation7 + $0x178] sm:$0xff]
    %v250 = vld [vmem:[#allocation7 + $0x180] sm:$0xff]
    %v251 = vld [vmem:[#allocation7 + $0x188] sm:$0xff]
    %v252 = vld [vmem:[#allocation7 + $0x190] sm:$0xff]
    %v253 = vld [vmem:[#allocation7 + $0x198] sm:$0xff]
    %v254 = vld [vmem:[#allocation7 + $0x1a0] sm:$0xff]
    %v255 = vld [vmem:[#allocation7 + $0x1a8] sm:$0xff]
    %v256 = vld [vmem:[#allocation7 + $0x1b0] sm:$0xff]
    %v257 = vld [vmem:[#allocation7 + $0x1b8] sm:$0xff]
    %v258 = vld [vmem:[#allocation7 + $0x1c0] sm:$0xff]
    %v259 = vld [vmem:[#allocation7 + $0x1c8] sm:$0xff]
    %v260 = vld [vmem:[#allocation7 + $0x1d0] sm:$0xff]
    %v261 = vld [vmem:[#allocation7 + $0x1d8] sm:$0xff]
    %v262 = vld [vmem:[#allocation7 + $0x1e0] sm:$0xff]
    %v263 = vld [vmem:[#allocation7 + $0x1e8] sm:$0xff]
    %v264 = vld [vmem:[#allocation7 + $0x1f0] sm:$0xff]
    %v265 = vld [vmem:[#allocation7 + $0x1f8] sm:$0xff]
    %v266 = vld [vmem:[%s4] sm:$0x3]
    %v268 = vlaneseq
    %v269 = vshrl.u32 %v268, 7
    %v270 = vsub.s32 0, %v269
    %v271 = vrot.slane %v266, %v270
    %v272 = vlaneseq
    %v273 = vshrl.u32 %v272, 7
    %v274 = vsub.s32 1, %v273
    %v275 = vrot.slane %v266, %v274
    %278 = vmatprep.subr.mxu0 %v203
    %279 = vmatpush1.msra.mxu0 %v202
    %280 = vmatprep.subr.mxu0 %v205
    %281 = vmatpush1.msra.mxu0 %v204
    %282 = vmatprep.subr.mxu0 %v207
    %283 = vmatpush1.msra.mxu0 %v206
    %284 = vmatprep.subr.mxu0 %v209
    %285 = vmatpush1.msra.mxu0 %v208
    %286 = vmatprep.subr.mxu0 %v211
    %287 = vmatpush1.msra.mxu0 %v210
    %288 = vmatprep.subr.mxu0 %v213
    %289 = vmatpush1.msra.mxu0 %v212
    %290 = vmatprep.subr.mxu0 %v215
    %291 = vmatpush1.msra.mxu0 %v214
    %292 = vmatprep.subr.mxu0 %v217
    %293 = vmatpush1.msra.mxu0 %v216
    %294 = vmatprep.subr.mxu0 %v219
    %295 = vmatpush1.msra.mxu0 %v218
    %296 = vmatprep.subr.mxu0 %v221
    %297 = vmatpush1.msra.mxu0 %v220
    %298 = vmatprep.subr.mxu0 %v223
    %299 = vmatpush1.msra.mxu0 %v222
    %300 = vmatprep.subr.mxu0 %v225
    %301 = vmatpush1.msra.mxu0 %v224
    %302 = vmatprep.subr.mxu0 %v227
    %303 = vmatpush1.msra.mxu0 %v226
    %304 = vmatprep.subr.mxu0 %v229
    %305 = vmatpush1.msra.mxu0 %v228
    %306 = vmatprep.subr.mxu0 %v231
    %307 = vmatpush1.msra.mxu0 %v230
    %308 = vmatprep.subr.mxu0 %v233
    %309 = vmatpush1.msra.mxu0 %v232
    %310 = vmatprep.subr.mxu0 %v235
    %311 = vmatpush1.msra.mxu0 %v234
    %312 = vmatprep.subr.mxu0 %v237
    %313 = vmatpush1.msra.mxu0 %v236
    %314 = vmatprep.subr.mxu0 %v239
    %315 = vmatpush1.msra.mxu0 %v238
    %316 = vmatprep.subr.mxu0 %v241
    %317 = vmatpush1.msra.mxu0 %v240
    %318 = vmatprep.subr.mxu0 %v243
    %319 = vmatpush1.msra.mxu0 %v242
    %320 = vmatprep.subr.mxu0 %v245
    %321 = vmatpush1.msra.mxu0 %v244
    %322 = vmatprep.subr.mxu0 %v247
    %323 = vmatpush1.msra.mxu0 %v246
    %324 = vmatprep.subr.mxu0 %v249
    %325 = vmatpush1.msra.mxu0 %v248
    %326 = vmatprep.subr.mxu0 %v251
    %327 = vmatpush1.msra.mxu0 %v250
    %328 = vmatprep.subr.mxu0 %v253
    %329 = vmatpush1.msra.mxu0 %v252
    %330 = vmatprep.subr.mxu0 %v255
    %331 = vmatpush1.msra.mxu0 %v254
    %332 = vmatprep.subr.mxu0 %v257
    %333 = vmatpush1.msra.mxu0 %v256
    %334 = vmatprep.subr.mxu0 %v259
    %335 = vmatpush1.msra.mxu0 %v258
    %336 = vmatprep.subr.mxu0 %v261
    %337 = vmatpush1.msra.mxu0 %v260
    %338 = vmatprep.subr.mxu0 %v263
    %339 = vmatpush1.msra.mxu0 %v262
    %340 = vmatprep.subr.mxu0 %v265
    %341 = vmatpush1.msra.mxu0 %v264
    %342 = vmatprep.mubr.f32.mxu0 %v201
    %343 = vmatmul.mubr.f32.gmra.mrb[0].mxu0 %v200
    %v344 = vpop.f32.mrb[0].mxu0
    %v345 = vadd.f32 %v271, %v344
    %v346 = vpop.f32.mrb[0].mxu0
    %v347 = vadd.f32 %v275, %v346
    %348 = vdwg.mxu0
    %vm349 = vcmp.gt.f32.partialorder %v345, 0.0
    %vm350 = vcmp.gt.f32.partialorder %v347, 0.0
    %v351 = vmul.f32 %v345, 0.1
    %v352 = vmul.f32 %v347, 0.1
    %v353 = vsel %vm349, %v345, %v351
    %v354 = vsel %vm350, %v347, %v352
    %v355 = vld [vmem:[#allocation8] sm:$0xff]
    %v356 = vld [vmem:[#allocation8 + $0x8] sm:$0xff]
    %v357 = vld [vmem:[#allocation8 + $0x10] sm:$0xff]
    %v358 = vld [vmem:[#allocation8 + $0x18] sm:$0xff]
    %v359 = vld [vmem:[#allocation8 + $0x20] sm:$0xff]
    %v360 = vld [vmem:[#allocation8 + $0x28] sm:$0xff]
    %v361 = vld [vmem:[#allocation8 + $0x30] sm:$0xff]
    %v362 = vld [vmem:[#allocation8 + $0x38] sm:$0xff]
    %v363 = vld [vmem:[#allocation8 + $0x40] sm:$0xff]
    %v364 = vld [vmem:[#allocation8 + $0x48] sm:$0xff]
    %v365 = vld [vmem:[#allocation8 + $0x50] sm:$0xff]
    %v366 = vld [vmem:[#allocation8 + $0x58] sm:$0xff]
    %v367 = vld [vmem:[#allocation8 + $0x60] sm:$0xff]
    %v368 = vld [vmem:[#allocation8 + $0x68] sm:$0xff]
    %v369 = vld [vmem:[#allocation8 + $0x70] sm:$0xff]
    %v370 = vld [vmem:[#allocation8 + $0x78] sm:$0xff]
    %v371 = vld [vmem:[#allocation8 + $0x80] sm:$0xff]
    %v372 = vld [vmem:[#allocation8 + $0x88] sm:$0xff]
    %v373 = vld [vmem:[#allocation8 + $0x90] sm:$0xff]
    %v374 = vld [vmem:[#allocation8 + $0x98] sm:$0xff]
    %v375 = vld [vmem:[#allocation8 + $0xa0] sm:$0xff]
    %v376 = vld [vmem:[#allocation8 + $0xa8] sm:$0xff]
    %v377 = vld [vmem:[#allocation8 + $0xb0] sm:$0xff]
    %v378 = vld [vmem:[#allocation8 + $0xb8] sm:$0xff]
    %v379 = vld [vmem:[#allocation8 + $0xc0] sm:$0xff]
    %v380 = vld [vmem:[#allocation8 + $0xc8] sm:$0xff]
    %v381 = vld [vmem:[#allocation8 + $0xd0] sm:$0xff]
    %v382 = vld [vmem:[#allocation8 + $0xd8] sm:$0xff]
    %v383 = vld [vmem:[#allocation8 + $0xe0] sm:$0xff]
    %v384 = vld [vmem:[#allocation8 + $0xe8] sm:$0xff]
    %v385 = vld [vmem:[#allocation8 + $0xf0] sm:$0xff]
    %v386 = vld [vmem:[#allocation8 + $0xf8] sm:$0xff]
    %v387 = vld [vmem:[%s6] sm:$0x1]
    %v389 = vlaneseq
    %v390 = vshrl.u32 %v389, 7
    %v391 = vsub.s32 0, %v390
    %v392 = vrot.slane %v387, %v391
    %394 = vmatprep.subr.mxu0 0.0
    %395 = vmatpush1.msra.mxu0 %v355
    %396 = vmatprep.subr.mxu0 0.0
    %397 = vmatpush1.msra.mxu0 %v356
    %398 = vmatprep.subr.mxu0 0.0
    %399 = vmatpush1.msra.mxu0 %v357
    %400 = vmatprep.subr.mxu0 0.0
    %401 = vmatpush1.msra.mxu0 %v358
    %402 = vmatprep.subr.mxu0 0.0
    %403 = vmatpush1.msra.mxu0 %v359
    %404 = vmatprep.subr.mxu0 0.0
    %405 = vmatpush1.msra.mxu0 %v360
    %406 = vmatprep.subr.mxu0 0.0
    %407 = vmatpush1.msra.mxu0 %v361
    %408 = vmatprep.subr.mxu0 0.0
    %409 = vmatpush1.msra.mxu0 %v362
    %410 = vmatprep.subr.mxu0 0.0
    %411 = vmatpush1.msra.mxu0 %v363
    %412 = vmatprep.subr.mxu0 0.0
    %413 = vmatpush1.msra.mxu0 %v364
    %414 = vmatprep.subr.mxu0 0.0
    %415 = vmatpush1.msra.mxu0 %v365
    %416 = vmatprep.subr.mxu0 0.0
    %417 = vmatpush1.msra.mxu0 %v366
    %418 = vmatprep.subr.mxu0 0.0
    %419 = vmatpush1.msra.mxu0 %v367
    %420 = vmatprep.subr.mxu0 0.0
    %421 = vmatpush1.msra.mxu0 %v368
    %422 = vmatprep.subr.mxu0 0.0
    %423 = vmatpush1.msra.mxu0 %v369
    %424 = vmatprep.subr.mxu0 0.0
    %425 = vmatpush1.msra.mxu0 %v370
    %426 = vmatprep.subr.mxu0 0.0
    %427 = vmatpush1.msra.mxu0 %v371
    %428 = vmatprep.subr.mxu0 0.0
    %429 = vmatpush1.msra.mxu0 %v372
    %430 = vmatprep.subr.mxu0 0.0
    %431 = vmatpush1.msra.mxu0 %v373
    %432 = vmatprep.subr.mxu0 0.0
    %433 = vmatpush1.msra.mxu0 %v374
    %434 = vmatprep.subr.mxu0 0.0
    %435 = vmatpush1.msra.mxu0 %v375
    %436 = vmatprep.subr.mxu0 0.0
    %437 = vmatpush1.msra.mxu0 %v376
    %438 = vmatprep.subr.mxu0 0.0
    %439 = vmatpush1.msra.mxu0 %v377
    %440 = vmatprep.subr.mxu0 0.0
    %441 = vmatpush1.msra.mxu0 %v378
    %442 = vmatprep.subr.mxu0 0.0
    %443 = vmatpush1.msra.mxu0 %v379
    %444 = vmatprep.subr.mxu0 0.0
    %445 = vmatpush1.msra.mxu0 %v380
    %446 = vmatprep.subr.mxu0 0.0
    %447 = vmatpush1.msra.mxu0 %v381
    %448 = vmatprep.subr.mxu0 0.0
    %449 = vmatpush1.msra.mxu0 %v382
    %450 = vmatprep.subr.mxu0 0.0
    %451 = vmatpush1.msra.mxu0 %v383
    %452 = vmatprep.subr.mxu0 0.0
    %453 = vmatpush1.msra.mxu0 %v384
    %454 = vmatprep.subr.mxu0 0.0
    %455 = vmatpush1.msra.mxu0 %v385
    %456 = vmatprep.subr.mxu0 0.0
    %457 = vmatpush1.msra.mxu0 %v386
    %458 = vmatprep.mubr.f32.mxu0 %v354
    %459 = vmatmul.mubr.f32.gmra.mrb[0].mxu0 %v353
    %v460 = vpop.f32.mrb[0].mxu0
    %v461 = vadd.f32 %v392, %v460
    %v462 = vpop.f32.mrb[0].mxu0
    %463 = vdwg.mxu0
    %464 = vst [vmem:[#allocation10] sm:$0x3] %v461
    // Predicated region
    $region46: #{tpu_custom_call.1} parent=1 // pred_check
      _
    $region47: #{tpu_custom_call.1} parent=1 // pred_check_branch
      %466 = sbr.rel (0) target = $region49
    $region48: #{tpu_custom_call.1} parent=1 // pred_region
      %s468 = ssub.s32 32, 32
      %469 = vsyncadd [#allocation4], %s468
      %s471 = sshll.u32 [#allocation10], 4
      %s472 = int_to_ptr.vmem [resolvable:$true] %s471
      %474 = dma.vmem_to_hbm [thread:$0]  %s472, 32, %s7, [#allocation4]
    $region49: #{tpu_custom_call.1} parent=1 // pred_fallthru
      _
    // Predicated region
    $region50: #{tpu_custom_call.1} parent=1 // pred_check
      _
    $region51: #{tpu_custom_call.1} parent=1 // pred_check_branch
      %476 = sbr.rel (0) target = $region53
    $region52: #{tpu_custom_call.1} parent=1 // pred_region
      %477 = dma.done [#allocation4], 32
    $region53: #{tpu_custom_call.1} parent=1 // pred_fallthru
      _
    %478 = vsyncpa [#allocation3], 1
    %479 = vsyncpa [#allocation6], 1
    %480 = vsyncpa [#allocation9], 1
    %481 = vsyncpa [#allocation4], 1

</llo_original>
